<compile_context>
chip_gen: v5e
topology: v5e:2x2
jax: 0.10.0
libtpu: 0.0.40
codegen_flags: <defaults>
</compile_context>

<pallas_src>
import jax
import jax.numpy as jnp
import numpy as np
from jax import lax
from jax.experimental import pallas as pl
from jax.experimental.pallas import tpu as pltpu


def make_ae_kernel(num_enc_layers, num_layers, eps=1e-5):
    """[Linear(no bias) -> BatchNorm1d(train, fused affine) -> ReLU] * L,
    emitting z after the encoder layers and recon_x at the end."""
    L = num_layers

    def kernel(x_ref, w_ref, gb_ref, recon_ref, z_ref):
        h = x_ref[...].astype(jnp.float32)               # (B, DP)
        for l in range(L):
            # Linear (bias omitted: exactly canceled by the BN mean subtraction)
            h = jnp.dot(h, w_ref[l], preferred_element_type=jnp.float32)
            # BatchNorm1d, training-mode batch statistics (biased variance),
            # with the affine fused into a single scale/shift.
            mu = jnp.mean(h, axis=0, keepdims=True)
            var = jnp.maximum(jnp.mean(h * h, axis=0, keepdims=True) - mu * mu, 0.0)
            gamma = gb_ref[l:l + 1, :]
            beta = gb_ref[L + l:L + l + 1, :]
            scale = gamma * lax.rsqrt(var + eps)          # EUP rsqrt
            h = (h - mu) * scale + beta
            # ReLU
            h = jnp.maximum(h, 0.0)
            if l == num_enc_layers - 1:
                z_ref[...] = h.astype(z_ref.dtype)
        recon_ref[...] = h.astype(recon_ref.dtype)

    return kernel


def ae_forward(x, params, num_enc_layers, eps=1e-5, feat_pad=128):
    """params: list of (w_t, b, gamma, beta) per layer; w_t is (Din, Dout).

    Returns (recon_x, z) — the first two outputs of AE.forward.
    """
    L = len(params)
    B = x.shape[0]
    DP = feat_pad
    latent = params[num_enc_layers - 1][0].shape[1]
    out_dim = params[-1][0].shape[1]

    # Pack ALL layer weights into one zero-padded (L, DP, DP) slab and all
    # gamma/beta vectors into one (2L, DP) slab => 3 input DMAs total.
    w_pack = np.zeros((L, DP, DP), np.float32)
    gb_pack = np.zeros((2 * L, DP), np.float32)
    for l, (w_t, b, g, be) in enumerate(params):
        din, dout = w_t.shape
        w_pack[l, :din, :dout] = np.asarray(w_t, np.float32)
        gb_pack[l, :dout] = np.asarray(g, np.float32)
        gb_pack[L + l, :dout] = np.asarray(be, np.float32)
        # `b` intentionally not packed: with BN(train) right after the Linear,
        # (h + b) - mean(h + b) == h - mean(h), so the bias is a no-op.
    w_pack = jnp.asarray(w_pack)
    gb_pack = jnp.asarray(gb_pack)

    # Lane-pad the input features to 128 (zero columns stay zero through
    # every layer because the padded weight columns / betas are zero).
    x_pad = jnp.zeros((B, DP), jnp.float32).at[:, :x.shape[1]].set(
        x.astype(jnp.float32))

    def full_vmem():
        return pl.BlockSpec(memory_space=pltpu.MemorySpace.VMEM)

    recon_pad, z_pad = pl.pallas_call(
        make_ae_kernel(num_enc_layers, L, eps),
        out_shape=(jax.ShapeDtypeStruct((B, DP), jnp.float32),   # recon_x slab
                   jax.ShapeDtypeStruct((B, DP), jnp.float32)),  # z slab
        in_specs=[full_vmem(), full_vmem(), full_vmem()],
        out_specs=(full_vmem(), full_vmem()),
    )(x_pad, w_pack, gb_pack)

    return recon_pad[:, :out_dim], z_pad[:, :latent]


def init_params(key, dims):
    """PyTorch-style init for each Linear + BatchNorm1d pair along `dims`."""
    params = []
    for dim_in, dim_out in zip(dims[:-1], dims[1:]):
        key, kw, kb, kg, kbe = jax.random.split(key, 5)
        bound = 1.0 / np.sqrt(dim_in)
        # nn.Linear: weight (out,in) ~ U(-bound, bound); stored transposed.
        w = jax.random.uniform(kw, (dim_out, dim_in), jnp.float32, -bound, bound)
        b = jax.random.uniform(kb, (dim_out,), jnp.float32, -bound, bound)
        # Non-default BN affine params so the gamma/beta path is exercised
        # (PyTorch defaults are gamma=1, beta=0, which would hide bugs).
        gamma = jax.random.uniform(kg, (dim_out,), jnp.float32, 0.5, 1.5)
        beta = jax.random.uniform(kbe, (dim_out,), jnp.float32, -0.5, 0.5)
        params.append((w.T, b, gamma, beta))
    return params


def ae_reference(x, params, num_enc_layers, eps=1e-5):
    """Pure-JAX reference of the same forward pass (WITH the Linear bias)."""
    h = x.astype(jnp.float32)
    z = None
    for i, (w_t, b, g, be) in enumerate(params):
        h = h @ w_t + b
        mu = jnp.mean(h, axis=0, keepdims=True)
        var = jnp.mean((h - mu) ** 2, axis=0, keepdims=True)
        h = (h - mu) / jnp.sqrt(var + eps) * g + be
        h = jnp.maximum(h, 0.0)
        if i == num_enc_layers - 1:
            z = h
    return h, z


if __name__ == "__main__":
    # Small shapes consistent with the module (flat feature vectors).
    encoder_layer_sizes = [32, 64]
    latent_size = 16
    decoder_layer_sizes = [64, 32]
    batch = 8
    # conditional=False (no idx2onehot / label concat path exercised), dropout=0.
    # TODO(synk): conditional=True path (idx2onehot + concat) left to JAX glue.

    key = jax.random.PRNGKey(0)
    key, kx = jax.random.split(key)
    x = jax.random.normal(kx, (batch, encoder_layer_sizes[0]), dtype=jnp.float32)

    # Full layer chain: encoder [32->64->16] then decoder [16->64->32].
    dims = encoder_layer_sizes + [latent_size] + decoder_layer_sizes
    params = init_params(key, dims)
    num_enc = len(encoder_layer_sizes)

    recon, z = ae_forward(x, params, num_enc)
    recon = jax.block_until_ready(recon)
    z = jax.block_until_ready(z)

    recon_ref, z_ref = ae_reference(x, params, num_enc)
    np.testing.assert_allclose(np.asarray(z), np.asarray(z_ref),
                               rtol=1e-4, atol=1e-4)
    np.testing.assert_allclose(np.asarray(recon), np.asarray(recon_ref),
                               rtol=1e-4, atol=1e-4)
    print("KERNEL_OK")
</pallas_src>

<mosaic_0001>
module attributes {stable_mosaic.version = 11 : i64} {
  func.func @kernel(%arg0: memref<8x128xf32, #tpu.memory_space<vmem>>, %arg1: memref<4x128x128xf32, #tpu.memory_space<vmem>>, %arg2: memref<8x128xf32, #tpu.memory_space<vmem>>, %arg3: memref<8x128xf32, #tpu.memory_space<vmem>>, %arg4: memref<8x128xf32, #tpu.memory_space<vmem>>) attributes {dimension_semantics = [], scalar_prefetch = 0 : i64, scratch_operands = 0 : i64, tpu.core_type = #tpu.core_type<tc>} {
    %c0 = arith.constant 0 : index
    %c0_0 = arith.constant 0 : index
    %0 = vector.load %arg0[%c0, %c0_0] : memref<8x128xf32, #tpu.memory_space<vmem>>, vector<8x128xf32>
    %c0_1 = arith.constant 0 : index
    %c0_2 = arith.constant 0 : index
    %c0_3 = arith.constant 0 : index
    %1 = vector.load %arg1[%c0_1, %c0_2, %c0_3] : memref<4x128x128xf32, #tpu.memory_space<vmem>>, vector<1x128x128xf32>
    %2 = vector.shape_cast %1 : vector<1x128x128xf32> to vector<128x128xf32>
    %cst = arith.constant dense<0.000000e+00> : vector<8x128xf32>
    %3 = tpu.matmul %0, %2, %cst {dimension_numbers = #tpu.dot_dimension_numbers<[1], [0], [0], [1], [0, 0, 1, 1], [], []>} : vector<8x128xf32>, vector<128x128xf32>, vector<8x128xf32> -> vector<8x128xf32>
    %cst_4 = arith.constant dense<0.000000e+00> : vector<128xf32>
    %4 = vector.multi_reduction <add>, %3, %cst_4 [0] : vector<8x128xf32> to vector<128xf32>
    %5 = vector.shape_cast %4 : vector<128xf32> to vector<1x128xf32>
    %cst_5 = arith.constant 8.000000e+00 : f32
    %6 = vector.broadcast %cst_5 : f32 to vector<1x128xf32>
    %7 = arith.divf %5, %6 : vector<1x128xf32>
    %8 = arith.mulf %3, %3 : vector<8x128xf32>
    %cst_6 = arith.constant dense<0.000000e+00> : vector<128xf32>
    %9 = vector.multi_reduction <add>, %8, %cst_6 [0] : vector<8x128xf32> to vector<128xf32>
    %10 = vector.shape_cast %9 : vector<128xf32> to vector<1x128xf32>
    %cst_7 = arith.constant 8.000000e+00 : f32
    %11 = vector.broadcast %cst_7 : f32 to vector<1x128xf32>
    %12 = arith.divf %10, %11 : vector<1x128xf32>
    %13 = arith.mulf %7, %7 : vector<1x128xf32>
    %14 = arith.subf %12, %13 : vector<1x128xf32>
    %cst_8 = arith.constant 0.000000e+00 : f32
    %15 = vector.broadcast %cst_8 : f32 to vector<1x128xf32>
    %16 = arith.maximumf %14, %15 : vector<1x128xf32>
    %c0_9 = arith.constant 0 : index
    %c0_10 = arith.constant 0 : index
    %17 = vector.load %arg2[%c0_9, %c0_10] : memref<8x128xf32, #tpu.memory_space<vmem>>, vector<1x128xf32>
    %c4 = arith.constant 4 : index
    %c0_11 = arith.constant 0 : index
    %18 = vector.load %arg2[%c4, %c0_11] : memref<8x128xf32, #tpu.memory_space<vmem>>, vector<1x128xf32>
    %cst_12 = arith.constant 9.99999974E-6 : f32
    %19 = vector.broadcast %cst_12 : f32 to vector<1x128xf32>
    %20 = arith.addf %16, %19 : vector<1x128xf32>
    %21 = math.rsqrt %20 : vector<1x128xf32>
    %22 = arith.mulf %17, %21 : vector<1x128xf32>
    %23 = vector.broadcast %7 : vector<1x128xf32> to vector<8x128xf32>
    %24 = arith.subf %3, %23 : vector<8x128xf32>
    %25 = vector.broadcast %22 : vector<1x128xf32> to vector<8x128xf32>
    %26 = arith.mulf %24, %25 : vector<8x128xf32>
    %27 = vector.broadcast %18 : vector<1x128xf32> to vector<8x128xf32>
    %28 = arith.addf %26, %27 : vector<8x128xf32>
    %cst_13 = arith.constant 0.000000e+00 : f32
    %29 = vector.broadcast %cst_13 : f32 to vector<8x128xf32>
    %30 = arith.maximumf %28, %29 : vector<8x128xf32>
    %c1 = arith.constant 1 : index
    %c0_14 = arith.constant 0 : index
    %c0_15 = arith.constant 0 : index
    %31 = vector.load %arg1[%c1, %c0_14, %c0_15] : memref<4x128x128xf32, #tpu.memory_space<vmem>>, vector<1x128x128xf32>
    %32 = vector.shape_cast %31 : vector<1x128x128xf32> to vector<128x128xf32>
    %cst_16 = arith.constant dense<0.000000e+00> : vector<8x128xf32>
    %33 = tpu.matmul %30, %32, %cst_16 {dimension_numbers = #tpu.dot_dimension_numbers<[1], [0], [0], [1], [0, 0, 1, 1], [], []>} : vector<8x128xf32>, vector<128x128xf32>, vector<8x128xf32> -> vector<8x128xf32>
    %cst_17 = arith.constant dense<0.000000e+00> : vector<128xf32>
    %34 = vector.multi_reduction <add>, %33, %cst_17 [0] : vector<8x128xf32> to vector<128xf32>
    %35 = vector.shape_cast %34 : vector<128xf32> to vector<1x128xf32>
    %cst_18 = arith.constant 8.000000e+00 : f32
    %36 = vector.broadcast %cst_18 : f32 to vector<1x128xf32>
    %37 = arith.divf %35, %36 : vector<1x128xf32>
    %38 = arith.mulf %33, %33 : vector<8x128xf32>
    %cst_19 = arith.constant dense<0.000000e+00> : vector<128xf32>
    %39 = vector.multi_reduction <add>, %38, %cst_19 [0] : vector<8x128xf32> to vector<128xf32>
    %40 = vector.shape_cast %39 : vector<128xf32> to vector<1x128xf32>
    %cst_20 = arith.constant 8.000000e+00 : f32
    %41 = vector.broadcast %cst_20 : f32 to vector<1x128xf32>
    %42 = arith.divf %40, %41 : vector<1x128xf32>
    %43 = arith.mulf %37, %37 : vector<1x128xf32>
    %44 = arith.subf %42, %43 : vector<1x128xf32>
    %cst_21 = arith.constant 0.000000e+00 : f32
    %45 = vector.broadcast %cst_21 : f32 to vector<1x128xf32>
    %46 = arith.maximumf %44, %45 : vector<1x128xf32>
    %c1_22 = arith.constant 1 : index
    %c0_23 = arith.constant 0 : index
    %47 = vector.load %arg2[%c1_22, %c0_23] : memref<8x128xf32, #tpu.memory_space<vmem>>, vector<1x128xf32>
    %c5 = arith.constant 5 : index
    %c0_24 = arith.constant 0 : index
    %48 = vector.load %arg2[%c5, %c0_24] : memref<8x128xf32, #tpu.memory_space<vmem>>, vector<1x128xf32>
    %cst_25 = arith.constant 9.99999974E-6 : f32
    %49 = vector.broadcast %cst_25 : f32 to vector<1x128xf32>
    %50 = arith.addf %46, %49 : vector<1x128xf32>
    %51 = math.rsqrt %50 : vector<1x128xf32>
    %52 = arith.mulf %47, %51 : vector<1x128xf32>
    %53 = vector.broadcast %37 : vector<1x128xf32> to vector<8x128xf32>
    %54 = arith.subf %33, %53 : vector<8x128xf32>
    %55 = vector.broadcast %52 : vector<1x128xf32> to vector<8x128xf32>
    %56 = arith.mulf %54, %55 : vector<8x128xf32>
    %57 = vector.broadcast %48 : vector<1x128xf32> to vector<8x128xf32>
    %58 = arith.addf %56, %57 : vector<8x128xf32>
    %cst_26 = arith.constant 0.000000e+00 : f32
    %59 = vector.broadcast %cst_26 : f32 to vector<8x128xf32>
    %60 = arith.maximumf %58, %59 : vector<8x128xf32>
    %c0_27 = arith.constant 0 : index
    %c0_28 = arith.constant 0 : index
    %61 = vector.load %arg4[%c0_27, %c0_28] : memref<8x128xf32, #tpu.memory_space<vmem>>, vector<8x128xf32>
    tpu.vector_store %arg4[%c0_27, %c0_28], %60 {strides = array<i32>} : memref<8x128xf32, #tpu.memory_space<vmem>>, vector<8x128xf32>,
    %c2 = arith.constant 2 : index
    %c0_29 = arith.constant 0 : index
    %c0_30 = arith.constant 0 : index
    %62 = vector.load %arg1[%c2, %c0_29, %c0_30] : memref<4x128x128xf32, #tpu.memory_space<vmem>>, vector<1x128x128xf32>
    %63 = vector.shape_cast %62 : vector<1x128x128xf32> to vector<128x128xf32>
    %cst_31 = arith.constant dense<0.000000e+00> : vector<8x128xf32>
    %64 = tpu.matmul %60, %63, %cst_31 {dimension_numbers = #tpu.dot_dimension_numbers<[1], [0], [0], [1], [0, 0, 1, 1], [], []>} : vector<8x128xf32>, vector<128x128xf32>, vector<8x128xf32> -> vector<8x128xf32>
    %cst_32 = arith.constant dense<0.000000e+00> : vector<128xf32>
    %65 = vector.multi_reduction <add>, %64, %cst_32 [0] : vector<8x128xf32> to vector<128xf32>
    %66 = vector.shape_cast %65 : vector<128xf32> to vector<1x128xf32>
    %cst_33 = arith.constant 8.000000e+00 : f32
    %67 = vector.broadcast %cst_33 : f32 to vector<1x128xf32>
    %68 = arith.divf %66, %67 : vector<1x128xf32>
    %69 = arith.mulf %64, %64 : vector<8x128xf32>
    %cst_34 = arith.constant dense<0.000000e+00> : vector<128xf32>
    %70 = vector.multi_reduction <add>, %69, %cst_34 [0] : vector<8x128xf32> to vector<128xf32>
    %71 = vector.shape_cast %70 : vector<128xf32> to vector<1x128xf32>
    %cst_35 = arith.constant 8.000000e+00 : f32
    %72 = vector.broadcast %cst_35 : f32 to vector<1x128xf32>
    %73 = arith.divf %71, %72 : vector<1x128xf32>
    %74 = arith.mulf %68, %68 : vector<1x128xf32>
    %75 = arith.subf %73, %74 : vector<1x128xf32>
    %cst_36 = arith.constant 0.000000e+00 : f32
    %76 = vector.broadcast %cst_36 : f32 to vector<1x128xf32>
    %77 = arith.maximumf %75, %76 : vector<1x128xf32>
    %c2_37 = arith.constant 2 : index
    %c0_38 = arith.constant 0 : index
    %78 = vector.load %arg2[%c2_37, %c0_38] : memref<8x128xf32, #tpu.memory_space<vmem>>, vector<1x128xf32>
    %c6 = arith.constant 6 : index
    %c0_39 = arith.constant 0 : index
    %79 = vector.load %arg2[%c6, %c0_39] : memref<8x128xf32, #tpu.memory_space<vmem>>, vector<1x128xf32>
    %cst_40 = arith.constant 9.99999974E-6 : f32
    %80 = vector.broadcast %cst_40 : f32 to vector<1x128xf32>
    %81 = arith.addf %77, %80 : vector<1x128xf32>
    %82 = math.rsqrt %81 : vector<1x128xf32>
    %83 = arith.mulf %78, %82 : vector<1x128xf32>
    %84 = vector.broadcast %68 : vector<1x128xf32> to vector<8x128xf32>
    %85 = arith.subf %64, %84 : vector<8x128xf32>
    %86 = vector.broadcast %83 : vector<1x128xf32> to vector<8x128xf32>
    %87 = arith.mulf %85, %86 : vector<8x128xf32>
    %88 = vector.broadcast %79 : vector<1x128xf32> to vector<8x128xf32>
    %89 = arith.addf %87, %88 : vector<8x128xf32>
    %cst_41 = arith.constant 0.000000e+00 : f32
    %90 = vector.broadcast %cst_41 : f32 to vector<8x128xf32>
    %91 = arith.maximumf %89, %90 : vector<8x128xf32>
    %c3 = arith.constant 3 : index
    %c0_42 = arith.constant 0 : index
    %c0_43 = arith.constant 0 : index
    %92 = vector.load %arg1[%c3, %c0_42, %c0_43] : memref<4x128x128xf32, #tpu.memory_space<vmem>>, vector<1x128x128xf32>
    %93 = vector.shape_cast %92 : vector<1x128x128xf32> to vector<128x128xf32>
    %cst_44 = arith.constant dense<0.000000e+00> : vector<8x128xf32>
    %94 = tpu.matmul %91, %93, %cst_44 {dimension_numbers = #tpu.dot_dimension_numbers<[1], [0], [0], [1], [0, 0, 1, 1], [], []>} : vector<8x128xf32>, vector<128x128xf32>, vector<8x128xf32> -> vector<8x128xf32>
    %cst_45 = arith.constant dense<0.000000e+00> : vector<128xf32>
    %95 = vector.multi_reduction <add>, %94, %cst_45 [0] : vector<8x128xf32> to vector<128xf32>
    %96 = vector.shape_cast %95 : vector<128xf32> to vector<1x128xf32>
    %cst_46 = arith.constant 8.000000e+00 : f32
    %97 = vector.broadcast %cst_46 : f32 to vector<1x128xf32>
    %98 = arith.divf %96, %97 : vector<1x128xf32>
    %99 = arith.mulf %94, %94 : vector<8x128xf32>
    %cst_47 = arith.constant dense<0.000000e+00> : vector<128xf32>
    %100 = vector.multi_reduction <add>, %99, %cst_47 [0] : vector<8x128xf32> to vector<128xf32>
    %101 = vector.shape_cast %100 : vector<128xf32> to vector<1x128xf32>
    %cst_48 = arith.constant 8.000000e+00 : f32
    %102 = vector.broadcast %cst_48 : f32 to vector<1x128xf32>
    %103 = arith.divf %101, %102 : vector<1x128xf32>
    %104 = arith.mulf %98, %98 : vector<1x128xf32>
    %105 = arith.subf %103, %104 : vector<1x128xf32>
    %cst_49 = arith.constant 0.000000e+00 : f32
    %106 = vector.broadcast %cst_49 : f32 to vector<1x128xf32>
    %107 = arith.maximumf %105, %106 : vector<1x128xf32>
    %c3_50 = arith.constant 3 : index
    %c0_51 = arith.constant 0 : index
    %108 = vector.load %arg2[%c3_50, %c0_51] : memref<8x128xf32, #tpu.memory_space<vmem>>, vector<1x128xf32>
    %c7 = arith.constant 7 : index
    %c0_52 = arith.constant 0 : index
    %109 = vector.load %arg2[%c7, %c0_52] : memref<8x128xf32, #tpu.memory_space<vmem>>, vector<1x128xf32>
    %cst_53 = arith.constant 9.99999974E-6 : f32
    %110 = vector.broadcast %cst_53 : f32 to vector<1x128xf32>
    %111 = arith.addf %107, %110 : vector<1x128xf32>
    %112 = math.rsqrt %111 : vector<1x128xf32>
    %113 = arith.mulf %108, %112 : vector<1x128xf32>
    %114 = vector.broadcast %98 : vector<1x128xf32> to vector<8x128xf32>
    %115 = arith.subf %94, %114 : vector<8x128xf32>
    %116 = vector.broadcast %113 : vector<1x128xf32> to vector<8x128xf32>
    %117 = arith.mulf %115, %116 : vector<8x128xf32>
    %118 = vector.broadcast %109 : vector<1x128xf32> to vector<8x128xf32>
    %119 = arith.addf %117, %118 : vector<8x128xf32>
    %cst_54 = arith.constant 0.000000e+00 : f32
    %120 = vector.broadcast %cst_54 : f32 to vector<8x128xf32>
    %121 = arith.maximumf %119, %120 : vector<8x128xf32>
    %c0_55 = arith.constant 0 : index
    %c0_56 = arith.constant 0 : index
    %122 = vector.load %arg3[%c0_55, %c0_56] : memref<8x128xf32, #tpu.memory_space<vmem>>, vector<8x128xf32>
    tpu.vector_store %arg3[%c0_55, %c0_56], %121 {strides = array<i32>} : memref<8x128xf32, #tpu.memory_space<vmem>>, vector<8x128xf32>,
    return
  }
}

</mosaic_0001>

<llo_original>
// kernel: tpu_custom_call.1
$region0: #{tpu_custom_call.1}
  #allocation0 [shape = 'u32[]', space=smem, size = 0x4, offset = 0x4, fixed_abs, tag = 'smem constant byte address 0x4 - core index']
  #allocation1 [shape = 'u32[72,128]{1,0:T(1,128)}', space=vmem, size = 0x9000, scoped, tag = 'internal scratch']
  %s0 = inlined_call_operand.hbm [shape: f32[8,128], index: 0, kind: input, shape index: {}]
  %s1 = inlined_call_operand.hbm [shape: f32[4,128,128], index: 1, kind: input, shape index: {}]
  %s2 = inlined_call_operand.hbm [shape: f32[8,128], index: 2, kind: input, shape index: {}]
  %s3 = inlined_call_operand.hbm [shape: f32[8,128], index: 3, kind: output, shape index: {0}]
  %s4 = inlined_call_operand.hbm [shape: f32[8,128], index: 4, kind: output, shape index: {1}]
  %5 = xla_tuple %s3, %s4
  %s6 = sld [smem:[#allocation0]]
  $region42: #{tpu_custom_call.1} parent=0
    _
  %s8 = ssub.s32 1, %s6
  %s9 = scalar_select 0, %s8, %s6
  $region1: #{tpu_custom_call.1} parent=0
    #allocation2 [shape = 'u8[4096]{0}', space=vmem, size = 0x1000, scoped, tag = 'input window, operand 0, single buffered']
    #allocation3 [shape = 's32[1]{0}', space=sflag, size = 0x4, scoped, tag = 'scoped memory for tpu_custom_call.1']
    #allocation4 [shape = 's32[1]{0}', space=sflag, size = 0x4, scoped, tag = 'scoped memory for tpu_custom_call.1']
    #allocation5 [shape = 'u8[262144]{0}', space=vmem, size = 0x40000, scoped, tag = 'input window, operand 1, single buffered']
    #allocation6 [shape = 's32[1]{0}', space=sflag, size = 0x4, scoped, tag = 'scoped memory for tpu_custom_call.1']
    #allocation7 [shape = 'u8[4096]{0}', space=vmem, size = 0x1000, scoped, tag = 'input window, operand 2, single buffered']
    #allocation8 [shape = 'u8[4096]{0}', space=vmem, size = 0x1000, scoped, tag = 'output window, operand 0, single buffered']
    #allocation9 [shape = 'u8[4096]{0}', space=vmem, size = 0x1000, scoped, tag = 'output window, operand 1, single buffered']
    #allocation10 [shape = 's32[1]{0}', space=sflag, size = 0x4, scoped, tag = 'scoped memory for tpu_custom_call.1']
    %10 = vsyncpa [#allocation3], 0
    %11 = vsyncpa [#allocation6], 0
    %12 = vsyncpa [#allocation4], 0
    %13 = vsyncpa [#allocation10], 0
    // Predicated region
    $region2: #{tpu_custom_call.1} parent=1 // pred_check
      _
    $region3: #{tpu_custom_call.1} parent=1 // pred_check_branch
      %15 = sbr.rel (0) target = $region5
    $region4: #{tpu_custom_call.1} parent=1 // pred_region
      %17 = vsyncadd [#allocation3], 0
      %s19 = sshll.u32 %s0, 4
      %s20 = int_to_ptr.hbm [resolvable:$true] %s19
      %s21 = sshll.u32 [#allocation2], 4
      %s22 = int_to_ptr.vmem [resolvable:$true] %s21
      %24 = dma.hbm_to_vmem [thread:$0]  %s20, 128, %s22, [#allocation3]
    $region5: #{tpu_custom_call.1} parent=1 // pred_fallthru
      _
    // Predicated region
    $region6: #{tpu_custom_call.1} parent=1 // pred_check
      _
    $region7: #{tpu_custom_call.1} parent=1 // pred_check_branch
      %26 = sbr.rel (0) target = $region9
    $region8: #{tpu_custom_call.1} parent=1 // pred_region
      %28 = vsyncadd [#allocation6], 0
      %s29 = sshll.u32 %s1, 4
      %s30 = int_to_ptr.hbm [resolvable:$true] %s29
      %s31 = sshll.u32 [#allocation5], 4
      %s32 = int_to_ptr.vmem [resolvable:$true] %s31
      %37 = dma.hbm_to_vmem [thread:$0]  %s30, 8192, %s32, [#allocation6], 128, 128, 8
    $region9: #{tpu_custom_call.1} parent=1 // pred_fallthru
      _
    // Predicated region
    $region10: #{tpu_custom_call.1} parent=1 // pred_check
      _
    $region11: #{tpu_custom_call.1} parent=1 // pred_check_branch
      %39 = sbr.rel (0) target = $region13
    $region12: #{tpu_custom_call.1} parent=1 // pred_region
      %41 = vsyncadd [#allocation6], 0
      %s43 = sshll.u32 %s2, 4
      %s44 = int_to_ptr.hbm [resolvable:$true] %s43
      %s45 = sshll.u32 [#allocation7], 4
      %s46 = int_to_ptr.vmem [resolvable:$true] %s45
      %48 = dma.hbm_to_vmem [thread:$0]  %s44, 128, %s46, [#allocation6]
    $region13: #{tpu_custom_call.1} parent=1 // pred_fallthru
      _
    // Predicated region
    $region14: #{tpu_custom_call.1} parent=1 // pred_check
      _
    $region15: #{tpu_custom_call.1} parent=1 // pred_check_branch
      %50 = sbr.rel (0) target = $region17
    $region16: #{tpu_custom_call.1} parent=1 // pred_region
      %52 = dma.done [#allocation3], 128
    $region17: #{tpu_custom_call.1} parent=1 // pred_fallthru
      _
    // Predicated region
    $region18: #{tpu_custom_call.1} parent=1 // pred_check
      _
    $region19: #{tpu_custom_call.1} parent=1 // pred_check_branch
      %54 = sbr.rel (0) target = $region21
    $region20: #{tpu_custom_call.1} parent=1 // pred_region
      %56 = dma.done [#allocation6], 8192
    $region21: #{tpu_custom_call.1} parent=1 // pred_fallthru
      _
    // Predicated region
    $region22: #{tpu_custom_call.1} parent=1 // pred_check
      _
    $region23: #{tpu_custom_call.1} parent=1 // pred_check_branch
      %58 = sbr.rel (0) target = $region25
    $region24: #{tpu_custom_call.1} parent=1 // pred_region
      %60 = dma.done [#allocation6], 128
    $region25: #{tpu_custom_call.1} parent=1 // pred_fallthru
      _
    %v61 = vld [vmem:[#allocation2] sm:$0xff]
    %v62 = vld [vmem:[#allocation5] sm:$0xff]
    %v63 = vld [vmem:[#allocation5 + $0x8] sm:$0xff]
    %v64 = vld [vmem:[#allocation5 + $0x10] sm:$0xff]
    %v65 = vld [vmem:[#allocation5 + $0x18] sm:$0xff]
    %v66 = vld [vmem:[#allocation5 + $0x20] sm:$0xff]
    %v67 = vld [vmem:[#allocation5 + $0x28] sm:$0xff]
    %v68 = vld [vmem:[#allocation5 + $0x30] sm:$0xff]
    %v69 = vld [vmem:[#allocation5 + $0x38] sm:$0xff]
    %v70 = vld [vmem:[#allocation5 + $0x40] sm:$0xff]
    %v71 = vld [vmem:[#allocation5 + $0x48] sm:$0xff]
    %v72 = vld [vmem:[#allocation5 + $0x50] sm:$0xff]
    %v73 = vld [vmem:[#allocation5 + $0x58] sm:$0xff]
    %v74 = vld [vmem:[#allocation5 + $0x60] sm:$0xff]
    %v75 = vld [vmem:[#allocation5 + $0x68] sm:$0xff]
    %v76 = vld [vmem:[#allocation5 + $0x70] sm:$0xff]
    %v77 = vld [vmem:[#allocation5 + $0x78] sm:$0xff]
    %78 = vmatpush.msra.mxu0 %v77
    %79 = vmatpush.msra.mxu0 %v76
    %80 = vmatpush.msra.mxu0 %v75
    %81 = vmatpush.msra.mxu0 %v74
    %82 = vmatpush.msra.mxu0 %v73
    %83 = vmatpush.msra.mxu0 %v72
    %84 = vmatpush.msra.mxu0 %v71
    %85 = vmatpush.msra.mxu0 %v70
    %86 = vmatpush.msra.mxu0 %v69
    %87 = vmatpush.msra.mxu0 %v68
    %88 = vmatpush.msra.mxu0 %v67
    %89 = vmatpush.msra.mxu0 %v66
    %90 = vmatpush.msra.mxu0 %v65
    %91 = vmatpush.msra.mxu0 %v64
    %92 = vmatpush.msra.mxu0 %v63
    %93 = vmatpush.msra.mxu0 %v62
    %94 = vmatmul.f32.gmra.mxu0 %v61
    %v95 = vpop.f32.mrf.mxu0
    %v96 = vadd.f32 0.0, %v95
    %97 = vdwg.mxu0
    %v98 = vrot.slane %v96, 4
    %v99 = vadd.f32 %v96, %v98
    %v100 = vrot.slane %v99, 2
    %v101 = vadd.f32 %v99, %v100
    %v102 = vrot.slane %v101, 1
    %v103 = vadd.f32 %v101, %v102
    %v104 = vrcp.pop 8.0
    %v105 = vmul.f32 8.0, %v104
    %v106 = vsub.f32 1.0, %v105
    %v107 = vmul.f32 %v104, %v106
    %v108 = vadd.f32 %v104, %v107
    %vm109 = vweird.f32 %v104
    %v110 = vsel %vm109, %v104, %v108
    %v111 = vmul.f32 %v103, %v110
    %v112 = vmul.f32 %v96, %v96
    %v113 = vrot.slane %v112, 4
    %v114 = vadd.f32 %v112, %v113
    %v115 = vrot.slane %v114, 2
    %v116 = vadd.f32 %v114, %v115
    %v117 = vrot.slane %v116, 1
    %v118 = vadd.f32 %v116, %v117
    %v119 = vmul.f32 %v118, %v110
    %v120 = vmul.f32 %v111, %v111
    %v121 = vsub.f32 %v119, %v120
    %v122 = vmax.f32 %v121, 0.0
    %v123 = vld [vmem:[#allocation7] sm:$0x1]
    %v124 = vld [vmem:[#allocation7 + $0x4] sm:$0x1]
    %v125 = vadd.f32 %v122, 1e-05
    %v126 = vrsqrt.pop %v125
    %v127 = vmul.f32 %v126, %v125
    %v128 = vmul.f32 %v127, %v126
    %v129 = vmul.f32 0.5, %v128
    %v130 = vsub.f32 1.5, %v129
    %v131 = vmul.f32 %v126, %v130
    %vm132 = vweird.f32 %v125
    %vm133 = vweird.f32 %v126
    %vm134 = vmor %vm132, %vm133
    %v135 = vsel %vm134, %v126, %v131
    %v136 = vmul.f32 %v123, %v135
    %v137 = vsub.f32 %v96, %v111
    %v138 = vperm.slane %v136, 0
    %v139 = vmul.f32 %v137, %v138
    %v140 = vperm.slane %v124, 0
    %v141 = vadd.f32 %v139, %v140
    %v142 = vmax.f32 %v141, 0.0
    %s143 = scalar_lea.vmem [#allocation5], 128
    %v144 = vld [vmem:[%s143] sm:$0xff]
    %v145 = vld [vmem:[%s143 + $0x8] sm:$0xff]
    %v146 = vld [vmem:[%s143 + $0x10] sm:$0xff]
    %v147 = vld [vmem:[%s143 + $0x18] sm:$0xff]
    %v148 = vld [vmem:[%s143 + $0x20] sm:$0xff]
    %v149 = vld [vmem:[%s143 + $0x28] sm:$0xff]
    %v150 = vld [vmem:[%s143 + $0x30] sm:$0xff]
    %v151 = vld [vmem:[%s143 + $0x38] sm:$0xff]
    %v152 = vld [vmem:[%s143 + $0x40] sm:$0xff]
    %v153 = vld [vmem:[%s143 + $0x48] sm:$0xff]
    %v154 = vld [vmem:[%s143 + $0x50] sm:$0xff]
    %v155 = vld [vmem:[%s143 + $0x58] sm:$0xff]
    %v156 = vld [vmem:[%s143 + $0x60] sm:$0xff]
    %v157 = vld [vmem:[%s143 + $0x68] sm:$0xff]
    %v158 = vld [vmem:[%s143 + $0x70] sm:$0xff]
    %v159 = vld [vmem:[%s143 + $0x78] sm:$0xff]
    %160 = vmatpush.msra.mxu0 %v159
    %161 = vmatpush.msra.mxu0 %v158
    %162 = vmatpush.msra.mxu0 %v157
    %163 = vmatpush.msra.mxu0 %v156
    %164 = vmatpush.msra.mxu0 %v155
    %165 = vmatpush.msra.mxu0 %v154
    %166 = vmatpush.msra.mxu0 %v153
    %167 = vmatpush.msra.mxu0 %v152
    %168 = vmatpush.msra.mxu0 %v151
    %169 = vmatpush.msra.mxu0 %v150
    %170 = vmatpush.msra.mxu0 %v149
    %171 = vmatpush.msra.mxu0 %v148
    %172 = vmatpush.msra.mxu0 %v147
    %173 = vmatpush.msra.mxu0 %v146
    %174 = vmatpush.msra.mxu0 %v145
    %175 = vmatpush.msra.mxu0 %v144
    %176 = vmatmul.f32.gmra.mxu0 %v142
    %v177 = vpop.f32.mrf.mxu0
    %v178 = vadd.f32 0.0, %v177
    %179 = vdwg.mxu0
    %v180 = vrot.slane %v178, 4
    %v181 = vadd.f32 %v178, %v180
    %v182 = vrot.slane %v181, 2
    %v183 = vadd.f32 %v181, %v182
    %v184 = vrot.slane %v183, 1
    %v185 = vadd.f32 %v183, %v184
    %v186 = vmul.f32 %v185, %v110
    %v187 = vmul.f32 %v178, %v178
    %v188 = vrot.slane %v187, 4
    %v189 = vadd.f32 %v187, %v188
    %v190 = vrot.slane %v189, 2
    %v191 = vadd.f32 %v189, %v190
    %v192 = vrot.slane %v191, 1
    %v193 = vadd.f32 %v191, %v192
    %v194 = vmul.f32 %v193, %v110
    %v195 = vmul.f32 %v186, %v186
    %v196 = vsub.f32 %v194, %v195
    %v197 = vmax.f32 %v196, 0.0
    %v198 = vld [vmem:[#allocation7 + $0x1] sm:$0x1]
    %v199 = vld [vmem:[#allocation7 + $0x5] sm:$0x1]
    %v200 = vadd.f32 %v197, 1e-05
    %v201 = vrsqrt.pop %v200
    %v202 = vmul.f32 %v201, %v200
    %v203 = vmul.f32 %v202, %v201
    %v204 = vmul.f32 0.5, %v203
    %v205 = vsub.f32 1.5, %v204
    %v206 = vmul.f32 %v201, %v205
    %vm207 = vweird.f32 %v200
    %vm208 = vweird.f32 %v201
    %vm209 = vmor %vm207, %vm208
    %v210 = vsel %vm209, %v201, %v206
    %v211 = vmul.f32 %v198, %v210
    %v212 = vsub.f32 %v178, %v186
    %v213 = vperm.slane %v211, 0
    %v214 = vmul.f32 %v212, %v213
    %v215 = vperm.slane %v199, 0
    %v216 = vadd.f32 %v214, %v215
    %v217 = vmax.f32 %v216, 0.0
    %218 = vst [vmem:[#allocation9] sm:$0xff] %v217
    %s219 = scalar_lea.vmem [#allocation5], 256
    %v220 = vld [vmem:[%s219] sm:$0xff]
    %v221 = vld [vmem:[%s219 + $0x8] sm:$0xff]
    %v222 = vld [vmem:[%s219 + $0x10] sm:$0xff]
    %v223 = vld [vmem:[%s219 + $0x18] sm:$0xff]
    %v224 = vld [vmem:[%s219 + $0x20] sm:$0xff]
    %v225 = vld [vmem:[%s219 + $0x28] sm:$0xff]
    %v226 = vld [vmem:[%s219 + $0x30] sm:$0xff]
    %v227 = vld [vmem:[%s219 + $0x38] sm:$0xff]
    %v228 = vld [vmem:[%s219 + $0x40] sm:$0xff]
    %v229 = vld [vmem:[%s219 + $0x48] sm:$0xff]
    %v230 = vld [vmem:[%s219 + $0x50] sm:$0xff]
    %v231 = vld [vmem:[%s219 + $0x58] sm:$0xff]
    %v232 = vld [vmem:[%s219 + $0x60] sm:$0xff]
    %v233 = vld [vmem:[%s219 + $0x68] sm:$0xff]
    %v234 = vld [vmem:[%s219 + $0x70] sm:$0xff]
    %v235 = vld [vmem:[%s219 + $0x78] sm:$0xff]
    %236 = vmatpush.msra.mxu0 %v235
    %237 = vmatpush.msra.mxu0 %v234
    %238 = vmatpush.msra.mxu0 %v233
    %239 = vmatpush.msra.mxu0 %v232
    %240 = vmatpush.msra.mxu0 %v231
    %241 = vmatpush.msra.mxu0 %v230
    %242 = vmatpush.msra.mxu0 %v229
    %243 = vmatpush.msra.mxu0 %v228
    %244 = vmatpush.msra.mxu0 %v227
    %245 = vmatpush.msra.mxu0 %v226
    %246 = vmatpush.msra.mxu0 %v225
    %247 = vmatpush.msra.mxu0 %v224
    %248 = vmatpush.msra.mxu0 %v223
    %249 = vmatpush.msra.mxu0 %v222
    %250 = vmatpush.msra.mxu0 %v221
    %251 = vmatpush.msra.mxu0 %v220
    %252 = vmatmul.f32.gmra.mxu0 %v217
    %v253 = vpop.f32.mrf.mxu0
    %v254 = vadd.f32 0.0, %v253
    %255 = vdwg.mxu0
    %v256 = vrot.slane %v254, 4
    %v257 = vadd.f32 %v254, %v256
    %v258 = vrot.slane %v257, 2
    %v259 = vadd.f32 %v257, %v258
    %v260 = vrot.slane %v259, 1
    %v261 = vadd.f32 %v259, %v260
    %v262 = vmul.f32 %v261, %v110
    %v263 = vmul.f32 %v254, %v254
    %v264 = vrot.slane %v263, 4
    %v265 = vadd.f32 %v263, %v264
    %v266 = vrot.slane %v265, 2
    %v267 = vadd.f32 %v265, %v266
    %v268 = vrot.slane %v267, 1
    %v269 = vadd.f32 %v267, %v268
    %v270 = vmul.f32 %v269, %v110
    %v271 = vmul.f32 %v262, %v262
    %v272 = vsub.f32 %v270, %v271
    %v273 = vmax.f32 %v272, 0.0
    %v274 = vld [vmem:[#allocation7 + $0x2] sm:$0x1]
    %v275 = vld [vmem:[#allocation7 + $0x6] sm:$0x1]
    %v276 = vadd.f32 %v273, 1e-05
    %v277 = vrsqrt.pop %v276
    %v278 = vmul.f32 %v277, %v276
    %v279 = vmul.f32 %v278, %v277
    %v280 = vmul.f32 0.5, %v279
    %v281 = vsub.f32 1.5, %v280
    %v282 = vmul.f32 %v277, %v281
    %vm283 = vweird.f32 %v276
    %vm284 = vweird.f32 %v277
    %vm285 = vmor %vm283, %vm284
    %v286 = vsel %vm285, %v277, %v282
    %v287 = vmul.f32 %v274, %v286
    %v288 = vsub.f32 %v254, %v262
    %v289 = vperm.slane %v287, 0
    %v290 = vmul.f32 %v288, %v289
    %v291 = vperm.slane %v275, 0
    %v292 = vadd.f32 %v290, %v291
    %v293 = vmax.f32 %v292, 0.0
    %s294 = scalar_lea.vmem [#allocation5], 384
    %v295 = vld [vmem:[%s294] sm:$0xff]
    %v296 = vld [vmem:[%s294 + $0x8] sm:$0xff]
    %v297 = vld [vmem:[%s294 + $0x10] sm:$0xff]
    %v298 = vld [vmem:[%s294 + $0x18] sm:$0xff]
    %v299 = vld [vmem:[%s294 + $0x20] sm:$0xff]
    %v300 = vld [vmem:[%s294 + $0x28] sm:$0xff]
    %v301 = vld [vmem:[%s294 + $0x30] sm:$0xff]
    %v302 = vld [vmem:[%s294 + $0x38] sm:$0xff]
    %v303 = vld [vmem:[%s294 + $0x40] sm:$0xff]
    %v304 = vld [vmem:[%s294 + $0x48] sm:$0xff]
    %v305 = vld [vmem:[%s294 + $0x50] sm:$0xff]
    %v306 = vld [vmem:[%s294 + $0x58] sm:$0xff]
    %v307 = vld [vmem:[%s294 + $0x60] sm:$0xff]
    %v308 = vld [vmem:[%s294 + $0x68] sm:$0xff]
    %v309 = vld [vmem:[%s294 + $0x70] sm:$0xff]
    %v310 = vld [vmem:[%s294 + $0x78] sm:$0xff]
    %311 = vmatpush.msra.mxu0 %v310
    %312 = vmatpush.msra.mxu0 %v309
    %313 = vmatpush.msra.mxu0 %v308
    %314 = vmatpush.msra.mxu0 %v307
    %315 = vmatpush.msra.mxu0 %v306
    %316 = vmatpush.msra.mxu0 %v305
    %317 = vmatpush.msra.mxu0 %v304
    %318 = vmatpush.msra.mxu0 %v303
    %319 = vmatpush.msra.mxu0 %v302
    %320 = vmatpush.msra.mxu0 %v301
    %321 = vmatpush.msra.mxu0 %v300
    %322 = vmatpush.msra.mxu0 %v299
    %323 = vmatpush.msra.mxu0 %v298
    %324 = vmatpush.msra.mxu0 %v297
    %325 = vmatpush.msra.mxu0 %v296
    %326 = vmatpush.msra.mxu0 %v295
    %327 = vmatmul.f32.gmra.mxu0 %v293
    %v328 = vpop.f32.mrf.mxu0
    %v329 = vadd.f32 0.0, %v328
    %330 = vdwg.mxu0
    %v331 = vrot.slane %v329, 4
    %v332 = vadd.f32 %v329, %v331
    %v333 = vrot.slane %v332, 2
    %v334 = vadd.f32 %v332, %v333
    %v335 = vrot.slane %v334, 1
    %v336 = vadd.f32 %v334, %v335
    %v337 = vmul.f32 %v336, %v110
    %v338 = vmul.f32 %v329, %v329
    %v339 = vrot.slane %v338, 4
    %v340 = vadd.f32 %v338, %v339
    %v341 = vrot.slane %v340, 2
    %v342 = vadd.f32 %v340, %v341
    %v343 = vrot.slane %v342, 1
    %v344 = vadd.f32 %v342, %v343
    %v345 = vmul.f32 %v344, %v110
    %v346 = vmul.f32 %v337, %v337
    %v347 = vsub.f32 %v345, %v346
    %v348 = vmax.f32 %v347, 0.0
    %v349 = vld [vmem:[#allocation7 + $0x3] sm:$0x1]
    %v350 = vld [vmem:[#allocation7 + $0x7] sm:$0x1]
    %v351 = vadd.f32 %v348, 1e-05
    %v352 = vrsqrt.pop %v351
    %v353 = vmul.f32 %v352, %v351
    %v354 = vmul.f32 %v353, %v352
    %v355 = vmul.f32 0.5, %v354
    %v356 = vsub.f32 1.5, %v355
    %v357 = vmul.f32 %v352, %v356
    %vm358 = vweird.f32 %v351
    %vm359 = vweird.f32 %v352
    %vm360 = vmor %vm358, %vm359
    %v361 = vsel %vm360, %v352, %v357
    %v362 = vmul.f32 %v349, %v361
    %v363 = vsub.f32 %v329, %v337
    %v364 = vperm.slane %v362, 0
    %v365 = vmul.f32 %v363, %v364
    %v366 = vperm.slane %v350, 0
    %v367 = vadd.f32 %v365, %v366
    %v368 = vmax.f32 %v367, 0.0
    %369 = vst [vmem:[#allocation8] sm:$0xff] %v368
    // Predicated region
    $region26: #{tpu_custom_call.1} parent=1 // pred_check
      _
    $region27: #{tpu_custom_call.1} parent=1 // pred_check_branch
      %371 = sbr.rel (0) target = $region29
    $region28: #{tpu_custom_call.1} parent=1 // pred_region
      %373 = vsyncadd [#allocation4], 0
      %s375 = sshll.u32 [#allocation8], 4
      %s376 = int_to_ptr.vmem [resolvable:$true] %s375
      %s377 = sshll.u32 %s3, 4
      %s378 = int_to_ptr.hbm [resolvable:$true] %s377
      %380 = dma.vmem_to_hbm [thread:$0]  %s376, 128, %s378, [#allocation4]
    $region29: #{tpu_custom_call.1} parent=1 // pred_fallthru
      _
    // Predicated region
    $region30: #{tpu_custom_call.1} parent=1 // pred_check
      _
    $region31: #{tpu_custom_call.1} parent=1 // pred_check_branch
      %382 = sbr.rel (0) target = $region33
    $region32: #{tpu_custom_call.1} parent=1 // pred_region
      %384 = vsyncadd [#allocation10], 0
      %s386 = sshll.u32 [#allocation9], 4
      %s387 = int_to_ptr.vmem [resolvable:$true] %s386
      %s388 = sshll.u32 %s4, 4
      %s389 = int_to_ptr.hbm [resolvable:$true] %s388
      %391 = dma.vmem_to_hbm [thread:$0]  %s387, 128, %s389, [#allocation10]
    $region33: #{tpu_custom_call.1} parent=1 // pred_fallthru
      _
    // Predicated region
    $region34: #{tpu_custom_call.1} parent=1 // pred_check
      _
    $region35: #{tpu_custom_call.1} parent=1 // pred_check_branch
      %393 = sbr.rel (0) target = $region37
    $region36: #{tpu_custom_call.1} parent=1 // pred_region
      %395 = dma.done [#allocation4], 128
    $region37: #{tpu_custom_call.1} parent=1 // pred_fallthru
      _
    // Predicated region
    $region38: #{tpu_custom_call.1} parent=1 // pred_check
      _
    $region39: #{tpu_custom_call.1} parent=1 // pred_check_branch
      %397 = sbr.rel (0) target = $region41
    $region40: #{tpu_custom_call.1} parent=1 // pred_region
      %399 = dma.done [#allocation10], 128
    $region41: #{tpu_custom_call.1} parent=1 // pred_fallthru
      _
    %400 = vsyncpa [#allocation3], 1
    %401 = vsyncpa [#allocation6], 1
    %402 = vsyncpa [#allocation4], 1
    %403 = vsyncpa [#allocation10], 1

</llo_original>
